<compile_context>
chip_gen: v7x
topology: tpu7x:2x2x1
jax: 0.10.0
libtpu: 0.0.40
codegen_flags: <defaults>
</compile_context>

<pallas_src>
import functools
import math

import jax
import jax.numpy as jnp
import numpy as np
from jax import lax
from jax.experimental import pallas as pl
from jax.experimental.pallas import tpu as pltpu


def _qkv_projection_kernel(scale, x_ref, w_ref, b_ref, q_ref, k_ref, v_ref):
    """Fused Q/K/V projection for one tile of batch rows (runs once per row).

    x_ref : (TR, D)   bf16 rows of x
    w_ref : (D, 3D)   bf16 fused [W_q | W_k | W_v]  (y = x @ W + b layout)
    b_ref : (1, 3D)   f32  fused [b_q | b_k | b_v]
    q_ref, k_ref, v_ref : (TR, D) bf16; 1/sqrt(D) is folded into Q here.
    """
    f32 = jnp.float32
    D = x_ref.shape[1]
    x = x_ref[...]
    # Slice the weight/bias refs directly into each matmul: no (D, 3D)
    # materialization in vregs, each half streams straight to the MXU.
    q = jnp.dot(x, w_ref[:, 0 * D:1 * D], preferred_element_type=f32) + b_ref[:, 0 * D:1 * D]
    k = jnp.dot(x, w_ref[:, 1 * D:2 * D], preferred_element_type=f32) + b_ref[:, 1 * D:2 * D]
    v = jnp.dot(x, w_ref[:, 2 * D:3 * D], preferred_element_type=f32) + b_ref[:, 2 * D:3 * D]
    q_ref[...] = (q * scale).astype(q_ref.dtype)
    k_ref[...] = k.astype(k_ref.dtype)
    v_ref[...] = v.astype(v_ref.dtype)


def _attention_kernel(valid_rows, q_ref, k_ref, v_ref, o_ref):
    """softmax(Q K^T) V for one query-row tile; K/V are the full (padded) batch.

    q_ref : (TQ, D)     bf16, already scaled by 1/sqrt(D)
    k_ref : (B_pad, D)  bf16, VMEM-resident
    v_ref : (B_pad, D)  bf16, VMEM-resident
    o_ref : (TQ, D)     f32
    valid_rows: number of real (un-padded) batch rows, or None if no padding.
    """
    f32 = jnp.float32
    # scores on the MXU: Q @ K^T, f32 accumulation.
    s = lax.dot_general(q_ref[...], k_ref[...],
                        dimension_numbers=(((1,), (1,)), ((), ())),
                        preferred_element_type=f32)                  # (TQ, B_pad)
    if valid_rows is not None:
        col = lax.broadcasted_iota(jnp.int32, s.shape, 1)
        s = jnp.where(col < valid_rows, s, jnp.float32(-1e30))       # mask padded keys
    # Softmax entirely in f32 (VPU/EUP); denominator reciprocal on the EUP.
    s = s - jnp.max(s, axis=-1, keepdims=True)
    e = jnp.exp(s)
    p = e * pl.reciprocal(jnp.sum(e, axis=-1, keepdims=True), approx=True)
    o_ref[...] = jnp.dot(p.astype(v_ref.dtype), v_ref[...],
                         preferred_element_type=f32).astype(o_ref.dtype)


def _round_up(n, m):
    return ((n + m - 1) // m) * m


def _vmem_limit(nbytes):
    # 2x headroom for compiler scratch / spills; clamp to [32 MiB, 64 MiB]
    # (64 MiB is the v7x per-core VMEM; v5e/v6e have 128 MiB so always safe).
    return int(min(max(2 * nbytes, 32 * 1024 * 1024), 64 * 1024 * 1024))


def self_attention_forward(params, x, *, block_q=256, compute_dtype=jnp.bfloat16):
    """Pallas forward matching torch SelfAttention.forward(x) for x of shape (B, D)."""
    B, D = x.shape
    scale = 1.0 / math.sqrt(float(D))
    itm = jnp.dtype(compute_dtype).itemsize

    # Fuse the three Linear layers into one (D, 3D) weight / (1, 3D) bias operand.
    w_qkv = jnp.concatenate([params["w_q"], params["w_k"], params["w_v"]],
                            axis=1).astype(compute_dtype)
    b_qkv = jnp.concatenate([params["b_q"], params["b_k"], params["b_v"]],
                            axis=1).astype(jnp.float32)

    # Tile over batch rows; pad B up to a multiple of the tile (masked later).
    tq = min(block_q, _round_up(B, 8))
    b_pad = _round_up(B, tq)
    x_c = x.astype(compute_dtype)
    if b_pad != B:
        x_c = jnp.pad(x_c, ((0, b_pad - B), (0, 0)))
    grid = (b_pad // tq,)

    # ---- Kernel 1: fused QKV projection (each batch row projected exactly once).
    proj_vmem = (D * 3 * D * itm            # fused weight (single-buffered)
                 + 3 * D * 4                # fused bias   (single-buffered)
                 + 2 * tq * D * itm         # x tile (double-buffered)
                 + 2 * 3 * tq * D * itm)    # q/k/v output tiles (double-buffered)
    q, k, v = pl.pallas_call(
        functools.partial(_qkv_projection_kernel, scale),
        out_shape=[jax.ShapeDtypeStruct((b_pad, D), compute_dtype)] * 3,
        grid_spec=pltpu.PrefetchScalarGridSpec(
            num_scalar_prefetch=0,
            grid=grid,
            in_specs=[
                pl.BlockSpec((tq, D), lambda i: (i, 0)),
                pl.BlockSpec((D, 3 * D), lambda i: (0, 0),
                             pipeline_mode=pl.Buffered(1)),
                pl.BlockSpec((1, 3 * D), lambda i: (0, 0),
                             pipeline_mode=pl.Buffered(1)),
            ],
            out_specs=[pl.BlockSpec((tq, D), lambda i: (i, 0))] * 3,
        ),
        compiler_params=pltpu.CompilerParams(
            dimension_semantics=("parallel",),
            vmem_limit_bytes=_vmem_limit(proj_vmem),
        ),
    )(x_c, w_qkv, b_qkv)

    # ---- Kernel 2: batch-wise attention over query-row tiles, K/V resident.
    attn_vmem = (2 * b_pad * D * itm        # K, V residents (single-buffered)
                 + 2 * tq * D * itm         # q tile (double-buffered)
                 + 2 * tq * D * 4           # f32 output tile (double-buffered)
                 + 2 * tq * b_pad * 4)      # scores / probs intermediates
    valid_rows = None if b_pad == B else B
    out = pl.pallas_call(
        functools.partial(_attention_kernel, valid_rows),
        out_shape=jax.ShapeDtypeStruct((b_pad, D), jnp.float32),
        grid_spec=pltpu.PrefetchScalarGridSpec(
            num_scalar_prefetch=0,
            grid=grid,
            in_specs=[
                pl.BlockSpec((tq, D), lambda i: (i, 0)),
                pl.BlockSpec((b_pad, D), lambda i: (0, 0),
                             pipeline_mode=pl.Buffered(1)),
                pl.BlockSpec((b_pad, D), lambda i: (0, 0),
                             pipeline_mode=pl.Buffered(1)),
            ],
            out_specs=pl.BlockSpec((tq, D), lambda i: (i, 0)),
        ),
        compiler_params=pltpu.CompilerParams(
            dimension_semantics=("parallel",),
            vmem_limit_bytes=_vmem_limit(attn_vmem),
        ),
    )(q, k, v)
    # TODO(synk): for very large B*D on v7x (K/V no longer VMEM-resident in 64 MiB),
    # switch kernel 2 to a key-tiled online-softmax (flash-style) variant.
    return out[:B] if b_pad != B else out


def self_attention_ref(params, x):
    """Pure-JAX reference mirroring the PyTorch forward (f32 throughout)."""
    D = x.shape[1]
    q = x @ params["w_q"] + params["b_q"]
    k = x @ params["w_k"] + params["b_k"]
    v = x @ params["w_v"] + params["b_v"]
    scores = (q @ k.T) / jnp.sqrt(jnp.float32(D))
    attn = jax.nn.softmax(scores, axis=-1)
    return attn @ v


def init_params(key, input_dim):
    """torch.nn.Linear default init (uniform +/- 1/sqrt(fan_in)); weights stored (in, out)."""
    bound = 1.0 / math.sqrt(input_dim)

    def linear(k):
        kw, kb = jax.random.split(k)
        w = jax.random.uniform(kw, (input_dim, input_dim), jnp.float32, -bound, bound)
        b = jax.random.uniform(kb, (1, input_dim), jnp.float32, -bound, bound)
        return w, b

    kq, kk, kv = jax.random.split(key, 3)
    p = {}
    p["w_q"], p["b_q"] = linear(kq)
    p["w_k"], p["b_k"] = linear(kk)
    p["w_v"], p["b_v"] = linear(kv)
    return p


if __name__ == "__main__":
    key = jax.random.PRNGKey(0)
    kp, kx, kx2 = jax.random.split(key, 3)

    B, D = 64, 128                      # small demo; D lane-aligned, B sublane-aligned
    params = init_params(kp, D)
    x = jax.random.normal(kx, (B, D), jnp.float32)

    # block_q=32 -> grid=(2,): exercises query tiling with VMEM-resident K/V.
    out = jax.block_until_ready(self_attention_forward(params, x, block_q=32))
    ref = self_attention_ref(params, x)
    assert out.shape == (B, D)
    np.testing.assert_allclose(np.asarray(out), np.asarray(ref), rtol=2e-2, atol=2e-2)

    # Non-divisible batch -> padded batch + masked key columns path.
    B2 = 50
    x2 = jax.random.normal(kx2, (B2, D), jnp.float32)
    out2 = jax.block_until_ready(self_attention_forward(params, x2, block_q=32))
    ref2 = self_attention_ref(params, x2)
    assert out2.shape == (B2, D)
    np.testing.assert_allclose(np.asarray(out2), np.asarray(ref2), rtol=2e-2, atol=2e-2)

    print("KERNEL_OK")
</pallas_src>

<mosaic_0001>
module attributes {stable_mosaic.version = 11 : i64} {
  func.func @_qkv_projection_kernel(%arg0: i32, %arg1: memref<32x128xbf16, #tpu.memory_space<vmem>>, %arg2: memref<128x384xbf16, #tpu.memory_space<vmem>>, %arg3: memref<1x384xf32, #tpu.memory_space<vmem>>, %arg4: memref<32x128xbf16, #tpu.memory_space<vmem>>, %arg5: memref<32x128xbf16, #tpu.memory_space<vmem>>, %arg6: memref<32x128xbf16, #tpu.memory_space<vmem>>) attributes {dimension_semantics = [#tpu.dimension_semantics<parallel>], iteration_bounds = array<i64: 2>, scalar_prefetch = 0 : i64, scratch_operands = 0 : i64, tpu.core_type = #tpu.core_type<tc>, window_params = [{transform_indices = @transform_0, window_bounds = array<i64: 32, 128>}, {pipeline_mode = #tpu.pipeline_mode<synchronous>, transform_indices = @transform_1, window_bounds = array<i64: 128, 384>}, {pipeline_mode = #tpu.pipeline_mode<synchronous>, transform_indices = @transform_2, window_bounds = array<i64: 1, 384>}, {transform_indices = @transform_3, window_bounds = array<i64: 32, 128>}, {transform_indices = @transform_4, window_bounds = array<i64: 32, 128>}, {transform_indices = @transform_5, window_bounds = array<i64: 32, 128>}]} {
    %c0 = arith.constant 0 : index
    %c0_0 = arith.constant 0 : index
    %0 = vector.load %arg1[%c0, %c0_0] : memref<32x128xbf16, #tpu.memory_space<vmem>>, vector<32x128xbf16>
    %c0_1 = arith.constant 0 : index
    %c0_2 = arith.constant 0 : index
    %1 = vector.load %arg2[%c0_1, %c0_2] : memref<128x384xbf16, #tpu.memory_space<vmem>>, vector<128x128xbf16>
    %cst = arith.constant dense<0.000000e+00> : vector<32x128xf32>
    %2 = tpu.matmul %0, %1, %cst {dimension_numbers = #tpu.dot_dimension_numbers<[1], [0], [0], [1], [0, 0, 1, 1], [], []>} : vector<32x128xbf16>, vector<128x128xbf16>, vector<32x128xf32> -> vector<32x128xf32>
    %c0_3 = arith.constant 0 : index
    %c0_4 = arith.constant 0 : index
    %3 = vector.load %arg3[%c0_3, %c0_4] : memref<1x384xf32, #tpu.memory_space<vmem>>, vector<1x128xf32>
    %4 = vector.broadcast %3 : vector<1x128xf32> to vector<32x128xf32>
    %5 = arith.addf %2, %4 : vector<32x128xf32>
    %c0_5 = arith.constant 0 : index
    %c128 = arith.constant 128 : index
    %6 = vector.load %arg2[%c0_5, %c128] : memref<128x384xbf16, #tpu.memory_space<vmem>>, vector<128x128xbf16>
    %cst_6 = arith.constant dense<0.000000e+00> : vector<32x128xf32>
    %7 = tpu.matmul %0, %6, %cst_6 {dimension_numbers = #tpu.dot_dimension_numbers<[1], [0], [0], [1], [0, 0, 1, 1], [], []>} : vector<32x128xbf16>, vector<128x128xbf16>, vector<32x128xf32> -> vector<32x128xf32>
    %c0_7 = arith.constant 0 : index
    %c128_8 = arith.constant 128 : index
    %8 = vector.load %arg3[%c0_7, %c128_8] : memref<1x384xf32, #tpu.memory_space<vmem>>, vector<1x128xf32>
    %9 = vector.broadcast %8 : vector<1x128xf32> to vector<32x128xf32>
    %10 = arith.addf %7, %9 : vector<32x128xf32>
    %c0_9 = arith.constant 0 : index
    %c256 = arith.constant 256 : index
    %11 = vector.load %arg2[%c0_9, %c256] : memref<128x384xbf16, #tpu.memory_space<vmem>>, vector<128x128xbf16>
    %cst_10 = arith.constant dense<0.000000e+00> : vector<32x128xf32>
    %12 = tpu.matmul %0, %11, %cst_10 {dimension_numbers = #tpu.dot_dimension_numbers<[1], [0], [0], [1], [0, 0, 1, 1], [], []>} : vector<32x128xbf16>, vector<128x128xbf16>, vector<32x128xf32> -> vector<32x128xf32>
    %c0_11 = arith.constant 0 : index
    %c256_12 = arith.constant 256 : index
    %13 = vector.load %arg3[%c0_11, %c256_12] : memref<1x384xf32, #tpu.memory_space<vmem>>, vector<1x128xf32>
    %14 = vector.broadcast %13 : vector<1x128xf32> to vector<32x128xf32>
    %15 = arith.addf %12, %14 : vector<32x128xf32>
    %cst_13 = arith.constant 0.0883883461 : f32
    %16 = vector.broadcast %cst_13 : f32 to vector<32x128xf32>
    %17 = arith.mulf %5, %16 : vector<32x128xf32>
    %18 = arith.truncf %17 : vector<32x128xf32> to vector<32x128xbf16>
    %c0_14 = arith.constant 0 : index
    %c0_15 = arith.constant 0 : index
    %19 = vector.load %arg4[%c0_14, %c0_15] : memref<32x128xbf16, #tpu.memory_space<vmem>>, vector<32x128xbf16>
    tpu.vector_store %arg4[%c0_14, %c0_15], %18 {strides = array<i32>} : memref<32x128xbf16, #tpu.memory_space<vmem>>, vector<32x128xbf16>,
    %20 = arith.truncf %10 : vector<32x128xf32> to vector<32x128xbf16>
    %c0_16 = arith.constant 0 : index
    %c0_17 = arith.constant 0 : index
    %21 = vector.load %arg5[%c0_16, %c0_17] : memref<32x128xbf16, #tpu.memory_space<vmem>>, vector<32x128xbf16>
    tpu.vector_store %arg5[%c0_16, %c0_17], %20 {strides = array<i32>} : memref<32x128xbf16, #tpu.memory_space<vmem>>, vector<32x128xbf16>,
    %22 = arith.truncf %15 : vector<32x128xf32> to vector<32x128xbf16>
    %c0_18 = arith.constant 0 : index
    %c0_19 = arith.constant 0 : index
    %23 = vector.load %arg6[%c0_18, %c0_19] : memref<32x128xbf16, #tpu.memory_space<vmem>>, vector<32x128xbf16>
    tpu.vector_store %arg6[%c0_18, %c0_19], %22 {strides = array<i32>} : memref<32x128xbf16, #tpu.memory_space<vmem>>, vector<32x128xbf16>,
    return
  }
  func.func @transform_0(%arg0: i32) -> (i32, i32) {
    %c0_i32 = arith.constant 0 : i32
    %c0_i32_0 = arith.constant 0 : i32
    return %arg0, %c0_i32 : i32, i32
  }
  func.func @transform_1(%arg0: i32) -> (i32, i32) {
    %c0_i32 = arith.constant 0 : i32
    %c0_i32_0 = arith.constant 0 : i32
    %c0_i32_1 = arith.constant 0 : i32
    return %c0_i32, %c0_i32_0 : i32, i32
  }
  func.func @transform_2(%arg0: i32) -> (i32, i32) {
    %c0_i32 = arith.constant 0 : i32
    %c0_i32_0 = arith.constant 0 : i32
    %c0_i32_1 = arith.constant 0 : i32
    return %c0_i32, %c0_i32_0 : i32, i32
  }
  func.func @transform_3(%arg0: i32) -> (i32, i32) {
    %c0_i32 = arith.constant 0 : i32
    %c0_i32_0 = arith.constant 0 : i32
    return %arg0, %c0_i32 : i32, i32
  }
  func.func @transform_4(%arg0: i32) -> (i32, i32) {
    %c0_i32 = arith.constant 0 : i32
    %c0_i32_0 = arith.constant 0 : i32
    return %arg0, %c0_i32 : i32, i32
  }
  func.func @transform_5(%arg0: i32) -> (i32, i32) {
    %c0_i32 = arith.constant 0 : i32
    %c0_i32_0 = arith.constant 0 : i32
    return %arg0, %c0_i32 : i32, i32
  }
}

</mosaic_0001>

<llo_original>
// kernel: tpu_custom_call.1
$region0: #{tpu_custom_call.1}
  #allocation0 [shape = 'u32[]', space=smem, size = 0x4, offset = 0x4, fixed_abs, tag = 'smem constant byte address 0x4 - core index']
  #allocation1 [shape = 'u32[144,128]{1,0:T(1,128)}', space=vmem, size = 0x12000, scoped, tag = 'internal scratch']
  %s0 = inlined_call_operand.hbm [shape: bf16[64,128], index: 0, kind: input, shape index: {}]
  %s1 = inlined_call_operand.hbm [shape: bf16[128,384], index: 1, kind: input, shape index: {}]
  %s2 = inlined_call_operand.vmem [shape: f32[1,384], index: 2, kind: input, shape index: {}]
  %s3 = inlined_call_operand.hbm [shape: bf16[64,128], index: 3, kind: output, shape index: {0}]
  %s4 = inlined_call_operand.hbm [shape: bf16[64,128], index: 4, kind: output, shape index: {1}]
  %s5 = inlined_call_operand.hbm [shape: bf16[64,128], index: 5, kind: output, shape index: {2}]
  %6 = xla_tuple %s3, %s4, %s5
  %s7 = sld [smem:[#allocation0]]
  $region69: #{tpu_custom_call.1} parent=0
    _
  %s9 = ssub.s32 1, %s7
  %s10 = scalar_select 0, %s9, %s7
  $region1: #{tpu_custom_call.1} parent=0
    #allocation2 [shape = 'u8[16384]{0}', space=vmem, size = 0x4000, scoped, tag = 'input window, operand 0']
    #allocation3 [shape = 's32[2]{0}', space=sflag, size = 0x8, scoped, tag = 'scoped memory for tpu_custom_call.1']
    #allocation4 [shape = 's32[2]{0}', space=sflag, size = 0x8, scoped, tag = 'scoped memory for tpu_custom_call.1']
    #allocation5 [shape = 'u8[98304]{0}', space=vmem, size = 0x18000, scoped, tag = 'input window, operand 1, single buffered']
    #allocation6 [shape = 's32[1]{0}', space=sflag, size = 0x4, scoped, tag = 'scoped memory for tpu_custom_call.1']
    #allocation7 [shape = 'u8[16384]{0}', space=vmem, size = 0x4000, scoped, tag = 'output window, operand 0']
    #allocation8 [shape = 'u8[16384]{0}', space=vmem, size = 0x4000, scoped, tag = 'output window, operand 1']
    #allocation9 [shape = 's32[2]{0}', space=sflag, size = 0x8, scoped, tag = 'scoped memory for tpu_custom_call.1']
    #allocation10 [shape = 'u8[16384]{0}', space=vmem, size = 0x4000, scoped, tag = 'output window, operand 2']
    %11 = vsyncpa [#allocation3], 0
    %s12 = scalar_lea.sflag [#allocation3], 1
    %13 = vsyncpa %s12, 0
    %14 = vsyncpa [#allocation6], 0
    %15 = vsyncpa [#allocation4], 0
    %s16 = scalar_lea.sflag [#allocation4], 1
    %17 = vsyncpa %s16, 0
    %18 = vsyncpa [#allocation9], 0
    %s19 = scalar_lea.sflag [#allocation9], 1
    %20 = vsyncpa %s19, 0
    loop: start=0, step=1, limit=4
    $region2: #{tpu_custom_call.1} parent=1 // loop_pre_header
      _
    $region3: #{tpu_custom_call.1} parent=1 // loop_header
      %s22 = sphi 0, %s26
      %p23 = scmp.ge.s32.totalorder %s22, 4
      %s32 = sphi 0, %s34
      %s35 = sphi 0, %s32
      %s36 = sphi 0, %s35
      %s52 = sphi 0, %s36
      %s56 = sphi 0, %s56
      %s58 = sphi 0, %s56
      %s59 = sphi 0, %s58
      %s73 = sphi 0, %s59
      %s77 = sphi 0, %s77
      %s79 = sphi 0, %s77
      %s80 = sphi 0, %s79
      %s94 = sphi 0, %s80
      %s100 = sphi 0, %s102
      %s103 = sphi 0, %s100
      %s104 = sphi 0, %s103
      %s120 = sphi 0, %s104
      %s126 = sphi 0, %s128
      %s129 = sphi 0, %s126
      %s130 = sphi 0, %s129
      %s146 = sphi 0, %s130
      %s152 = sphi 0, %s154
      %s155 = sphi 0, %s152
      %s156 = sphi 0, %s155
      %s172 = sphi 0, %s156
    $region4: #{tpu_custom_call.1} parent=1 // loop_header_branch
      %25 = sbr.rel (%p23) target = $region8
    $region5: #{tpu_custom_call.1} parent=1 // loop_body
      %s27 = ssub.s32 %s22, 1
      %s28 = ssub.s32 %s22, 2
      %s29 = sadd.s32 %s22, 1
      %s30 = ssub.s32 %s22, %s29
      %p31 = scmp.eq.s32.totalorder %s30, 0
      %s33 = sadd.s32 %s32, 1
      %s34 = scalar_select %p31, %s32, %s33
      %p37 = pneg %p31
      %p38 = scmp.eq.s32.totalorder %s22, 1
      %p39 = por %p37, %p38
      %p40 = scmp.ne.s32.totalorder %s32, %s35
      %p41 = scmp.eq.s32.totalorder %s22, 0
      %p42 = por %p40, %p41
      %p43 = scmp.ne.s32.totalorder %s32, %s35
      %p44 = scmp.eq.s32.totalorder %s27, 1
      %p45 = por %p43, %p44
      %p46 = scmp.ne.s32.totalorder %s35, %s36
      %p47 = scmp.eq.s32.totalorder %s27, 0
      %p48 = por %p46, %p47
      %p49 = scmp.ne.s32.totalorder %s35, %s36
      %p50 = scmp.eq.s32.totalorder %s28, 1
      %p51 = por %p49, %p50
      %p53 = scmp.ne.s32.totalorder %s36, %s52
      %p54 = scmp.eq.s32.totalorder %s28, 0
      %p55 = por %p53, %p54
      %s57 = sadd.s32 %s56, 1
      %p60 = scmp.eq.s32.totalorder %s22, 1
      %p61 = scmp.ne.s32.totalorder %s56, %s58
      %p62 = scmp.eq.s32.totalorder %s22, 0
      %p63 = por %p61, %p62
      %p64 = scmp.ne.s32.totalorder %s56, %s58
      %p65 = scmp.eq.s32.totalorder %s27, 1
      %p66 = por %p64, %p65
      %p67 = scmp.ne.s32.totalorder %s58, %s59
      %p68 = scmp.eq.s32.totalorder %s27, 0
      %p69 = por %p67, %p68
      %p70 = scmp.ne.s32.totalorder %s58, %s59
      %p71 = scmp.eq.s32.totalorder %s28, 1
      %p72 = por %p70, %p71
      %p74 = scmp.ne.s32.totalorder %s59, %s73
      %p75 = scmp.eq.s32.totalorder %s28, 0
      %p76 = por %p74, %p75
      %s78 = sadd.s32 %s77, 1
      %p81 = scmp.eq.s32.totalorder %s22, 1
      %p82 = scmp.ne.s32.totalorder %s77, %s79
      %p83 = scmp.eq.s32.totalorder %s22, 0
      %p84 = por %p82, %p83
      %p85 = scmp.ne.s32.totalorder %s77, %s79
      %p86 = scmp.eq.s32.totalorder %s27, 1
      %p87 = por %p85, %p86
      %p88 = scmp.ne.s32.totalorder %s79, %s80
      %p89 = scmp.eq.s32.totalorder %s27, 0
      %p90 = por %p88, %p89
      %p91 = scmp.ne.s32.totalorder %s79, %s80
      %p92 = scmp.eq.s32.totalorder %s28, 1
      %p93 = por %p91, %p92
      %p95 = scmp.ne.s32.totalorder %s80, %s94
      %p96 = scmp.eq.s32.totalorder %s28, 0
      %p97 = por %p95, %p96
      %s98 = ssub.s32 %s22, %s29
      %p99 = scmp.eq.s32.totalorder %s98, 0
      %s101 = sadd.s32 %s100, 1
      %s102 = scalar_select %p99, %s100, %s101
      %p105 = pneg %p99
      %p106 = scmp.eq.s32.totalorder %s22, 1
      %p107 = por %p105, %p106
      %p108 = scmp.ne.s32.totalorder %s100, %s103
      %p109 = scmp.eq.s32.totalorder %s22, 0
      %p110 = por %p108, %p109
      %p111 = scmp.ne.s32.totalorder %s100, %s103
      %p112 = scmp.eq.s32.totalorder %s27, 1
      %p113 = por %p111, %p112
      %p114 = scmp.ne.s32.totalorder %s103, %s104
      %p115 = scmp.eq.s32.totalorder %s27, 0
      %p116 = por %p114, %p115
      %p117 = scmp.ne.s32.totalorder %s103, %s104
      %p118 = scmp.eq.s32.totalorder %s28, 1
      %p119 = por %p117, %p118
      %p121 = scmp.ne.s32.totalorder %s104, %s120
      %p122 = scmp.eq.s32.totalorder %s28, 0
      %p123 = por %p121, %p122
      %s124 = ssub.s32 %s22, %s29
      %p125 = scmp.eq.s32.totalorder %s124, 0
      %s127 = sadd.s32 %s126, 1
      %s128 = scalar_select %p125, %s126, %s127
      %p131 = pneg %p125
      %p132 = scmp.eq.s32.totalorder %s22, 1
      %p133 = por %p131, %p132
      %p134 = scmp.ne.s32.totalorder %s126, %s129
      %p135 = scmp.eq.s32.totalorder %s22, 0
      %p136 = por %p134, %p135
      %p137 = scmp.ne.s32.totalorder %s126, %s129
      %p138 = scmp.eq.s32.totalorder %s27, 1
      %p139 = por %p137, %p138
      %p140 = scmp.ne.s32.totalorder %s129, %s130
      %p141 = scmp.eq.s32.totalorder %s27, 0
      %p142 = por %p140, %p141
      %p143 = scmp.ne.s32.totalorder %s129, %s130
      %p144 = scmp.eq.s32.totalorder %s28, 1
      %p145 = por %p143, %p144
      %p147 = scmp.ne.s32.totalorder %s130, %s146
      %p148 = scmp.eq.s32.totalorder %s28, 0
      %p149 = por %p147, %p148
      %s150 = ssub.s32 %s22, %s29
      %p151 = scmp.eq.s32.totalorder %s150, 0
      %s153 = sadd.s32 %s152, 1
      %s154 = scalar_select %p151, %s152, %s153
      %p157 = pneg %p151
      %p158 = scmp.eq.s32.totalorder %s22, 1
      %p159 = por %p157, %p158
      %p160 = scmp.ne.s32.totalorder %s152, %s155
      %p161 = scmp.eq.s32.totalorder %s22, 0
      %p162 = por %p160, %p161
      %p163 = scmp.ne.s32.totalorder %s152, %s155
      %p164 = scmp.eq.s32.totalorder %s27, 1
      %p165 = por %p163, %p164
      %p166 = scmp.ne.s32.totalorder %s155, %s156
      %p167 = scmp.eq.s32.totalorder %s27, 0
      %p168 = por %p166, %p167
      %p169 = scmp.ne.s32.totalorder %s155, %s156
      %p170 = scmp.eq.s32.totalorder %s28, 1
      %p171 = por %p169, %p170
      %p173 = scmp.ne.s32.totalorder %s156, %s172
      %p174 = scmp.eq.s32.totalorder %s28, 0
      %p175 = por %p173, %p174
      %p176 = scmp.le.s32.totalorder 1, %s22
      %p177 = scmp.lt.s32.totalorder %s22, 3
      %p178 = pnand %p176, %p177
      %p179 = pneg %p178
      // Predicated region
      $region9: #{tpu_custom_call.1} parent=5 // pred_check
        _
      $region10: #{tpu_custom_call.1} parent=5 // pred_check_branch
        %181 = sbr.rel (%p178) target = $region12
      $region11: #{tpu_custom_call.1} parent=5 // pred_region
        %s182 = ssub.s32 %s22, 1
        // Predicated region
        $region13: #{tpu_custom_call.1} parent=11 // pred_check
          %p183 = pneg %p69
        $region14: #{tpu_custom_call.1} parent=11 // pred_check_branch
          %185 = sbr.rel (%p183) target = $region16
        $region15: #{tpu_custom_call.1} parent=11 // pred_region
          %s187 = ssub.s32 3072, 3072
          %188 = vsyncadd [#allocation6], %s187
          %s189 = sshll.u32 [#allocation5], 4
          %s190 = int_to_ptr.vmem [resolvable:$true] %s189
          %195 = dma.hbm_to_vmem [thread:$0]  %s1, 3072, %s190, [#allocation6], 192, 192, 12
        $region16: #{tpu_custom_call.1} parent=11 // pred_fallthru
          _
        // Predicated region
        $region17: #{tpu_custom_call.1} parent=11 // pred_check
          %p196 = pneg %p90
        $region18: #{tpu_custom_call.1} parent=11 // pred_check_branch
          %198 = sbr.rel (%p196) target = $region20
        $region19: #{tpu_custom_call.1} parent=11 // pred_region
          _
        $region20: #{tpu_custom_call.1} parent=11 // pred_fallthru
          _
      $region12: #{tpu_custom_call.1} parent=5 // pred_fallthru
        _
      %p199 = scmp.lt.s32.totalorder %s22, 2
      // Predicated region
      $region21: #{tpu_custom_call.1} parent=5 // pred_check
        %p200 = pneg %p199
      $region22: #{tpu_custom_call.1} parent=5 // pred_check_branch
        %202 = sbr.rel (%p200) target = $region24
      $region23: #{tpu_custom_call.1} parent=5 // pred_region
        // Predicated region
        $region25: #{tpu_custom_call.1} parent=23 // pred_check
          %p203 = pneg %p42
        $region26: #{tpu_custom_call.1} parent=23 // pred_check_branch
          %205 = sbr.rel (%p203) target = $region28
        $region27: #{tpu_custom_call.1} parent=23 // pred_region
          %s206 = sand.u32 %s32, 1
          %s207 = scalar_lea.sflag [#allocation3], %s206
          %s208 = sand.u32 %s32, 1
          %s209 = smul.addr %s208, 16
          %s210 = scalar_lea.vmem [#allocation2], %s209
          %s211 = smul.u32 4, %s22
          %s213 = ssub.s32 256, 256
          %214 = vsyncadd %s207, %s213
          %s215 = smul.addr %s211, 64
          %s216 = scalar_lea.hbm %s0, %s215
          %s217 = sshll.u32 %s210, 4
          %s218 = int_to_ptr.vmem [resolvable:$true] %s217
          %223 = dma.hbm_to_vmem [thread:$0]  %s216, 256, %s218, %s207, 64, 64, 4
        $region28: #{tpu_custom_call.1} parent=23 // pred_fallthru
          _
      $region24: #{tpu_custom_call.1} parent=5 // pred_fallthru
        _
      %p224 = scmp.le.s32.totalorder 1, %s22
      %p225 = scmp.lt.s32.totalorder %s22, 3
      %p226 = pnand %p224, %p225
      %p227 = pneg %p226
      // Predicated region
      $region29: #{tpu_custom_call.1} parent=5 // pred_check
        _
      $region30: #{tpu_custom_call.1} parent=5 // pred_check_branch
        %229 = sbr.rel (%p226) target = $region32
      $region31: #{tpu_custom_call.1} parent=5 // pred_region
        %s230 = ssub.s32 %s22, 1
        %s231 = sand.u32 %s35, 1
        %s232 = scalar_lea.sflag [#allocation3], %s231
        %s233 = sand.u32 %s35, 1
        %s234 = smul.addr %s233, 16
        %s235 = scalar_lea.vmem [#allocation2], %s234
        // Predicated region
        $region33: #{tpu_custom_call.1} parent=31 // pred_check
          %p236 = pneg %p48
        $region34: #{tpu_custom_call.1} parent=31 // pred_check_branch
          %238 = sbr.rel (%p236) target = $region36
        $region35: #{tpu_custom_call.1} parent=31 // pred_region
          %239 = dma.done %s232, 256
        $region36: #{tpu_custom_call.1} parent=31 // pred_fallthru
          _
        // Predicated region
        $region37: #{tpu_custom_call.1} parent=31 // pred_check
          %p240 = pneg %p69
        $region38: #{tpu_custom_call.1} parent=31 // pred_check_branch
          %242 = sbr.rel (%p240) target = $region40
        $region39: #{tpu_custom_call.1} parent=31 // pred_region
          %243 = dma.done [#allocation6], 3072
        $region40: #{tpu_custom_call.1} parent=31 // pred_fallthru
          _
        %s244 = sand.u32 %s35, 1
        %s245 = scalar_lea.sflag [#allocation3], %s244
        %s246 = sand.u32 %s35, 1
        %s247 = smul.addr %s246, 16
        %s248 = scalar_lea.vmem [#allocation2], %s247
        %p249 = pneg %p48
        %p250 = pneg %p45
        %p251 = pneg %p69
        %p252 = pneg %p66
        %p253 = pneg %p90
        %p254 = pneg %p87
        %p255 = pneg %p116
        %p256 = pneg %p113
        %s257 = sand.u32 %s103, 1
        %s258 = scalar_lea.sflag [#allocation4], %s257
        %s259 = sand.u32 %s103, 1
        %s260 = smul.addr %s259, 16
        %s261 = scalar_lea.vmem [#allocation7], %s260
        %p262 = pneg %p142
        %p263 = pneg %p139
        %s264 = sand.u32 %s27, 1
        %s265 = scalar_lea.sflag [#allocation9], %s264
        %s266 = sand.u32 %s129, 1
        %s267 = smul.addr %s266, 16
        %s268 = scalar_lea.vmem [#allocation8], %s267
        %p269 = pneg %p168
        %p270 = pneg %p165
        %s271 = sand.u32 %s27, 1
        %s272 = scalar_lea.sflag [#allocation9], %s271
        %s273 = sand.u32 %s155, 1
        %s274 = smul.addr %s273, 16
        %s275 = scalar_lea.vmem [#allocation10], %s274
        %s276 = smul.u32 4, %s27
        %s277 = smul.u32 4, %s27
        %s278 = smul.u32 4, %s27
        %s279 = smul.u32 4, %s27
        %v281 = vld [vmem:[%s235] sm:$0xf]
        %v282 = vld [vmem:[%s235 + $0x4] sm:$0xf]
        %v283 = vld [vmem:[%s235 + $0x8] sm:$0xf]
        %v284 = vld [vmem:[%s235 + $0xc] sm:$0xf]
        %v285 = vld [vmem:[#allocation5] sm:$0xf]
        %v286 = vld [vmem:[#allocation5 + $0xc] sm:$0xf]
        %v287 = vld [vmem:[#allocation5 + $0x18] sm:$0xf]
        %v288 = vld [vmem:[#allocation5 + $0x24] sm:$0xf]
        %v289 = vld [vmem:[#allocation5 + $0x30] sm:$0xf]
        %v290 = vld [vmem:[#allocation5 + $0x3c] sm:$0xf]
        %v291 = vld [vmem:[#allocation5 + $0x48] sm:$0xf]
        %v292 = vld [vmem:[#allocation5 + $0x54] sm:$0xf]
        %v293 = vld [vmem:[#allocation5 + $0x60] sm:$0xf]
        %v294 = vld [vmem:[#allocation5 + $0x6c] sm:$0xf]
        %v295 = vld [vmem:[#allocation5 + $0x78] sm:$0xf]
        %v296 = vld [vmem:[#allocation5 + $0x84] sm:$0xf]
        %v297 = vld [vmem:[#allocation5 + $0x90] sm:$0xf]
        %v298 = vld [vmem:[#allocation5 + $0x9c] sm:$0xf]
        %v299 = vld [vmem:[#allocation5 + $0xa8] sm:$0xf]
        %v300 = vld [vmem:[#allocation5 + $0xb4] sm:$0xf]
        %v301 = vld [vmem:[%s2] sm:$0x1]
        %v303 = vlaneseq
        %v304 = vshrl.u32 %v303, 7
        %v305 = vsub.s32 0, %v304
        %v306 = vrot.slane %v301, %v305
        %v312 = vunpack.c.l.b16 %v281
        %v313 = vunpack.c.l.b16 %v282
        %v314 = vunpack.c.l.b16 %v283
        %v315 = vunpack.c.l.b16 %v284
        %v316 = vpack.c.b16 %v313, %v312
        %v317 = vpack.c.b16 %v315, %v314
        %v336 = vunpack.c.l.b16 %v285
        %v337 = vunpack.c.l.b16 %v286
        %v338 = vunpack.c.l.b16 %v287
        %v339 = vunpack.c.l.b16 %v288
        %v340 = vunpack.c.l.b16 %v289
        %v341 = vunpack.c.l.b16 %v290
        %v342 = vunpack.c.l.b16 %v291
        %v343 = vunpack.c.l.b16 %v292
        %v344 = vunpack.c.l.b16 %v293
        %v345 = vunpack.c.l.b16 %v294
        %v346 = vunpack.c.l.b16 %v295
        %v347 = vunpack.c.l.b16 %v296
        %v348 = vunpack.c.l.b16 %v297
        %v349 = vunpack.c.l.b16 %v298
        %v350 = vunpack.c.l.b16 %v299
        %v351 = vunpack.c.l.b16 %v300
        %v352 = vpack.c.b16 %v337, %v336
        %v353 = vpack.c.b16 %v339, %v338
        %v354 = vpack.c.b16 %v341, %v340
        %v355 = vpack.c.b16 %v343, %v342
        %v356 = vpack.c.b16 %v345, %v344
        %v357 = vpack.c.b16 %v347, %v346
        %v358 = vpack.c.b16 %v349, %v348
        %v359 = vpack.c.b16 %v351, %v350
        %368 = vmatprep.subr.bf16.mxu0 0
        %369 = vmatpush1.bf16.msra.mxu0 %v352
        %370 = vmatprep.subr.bf16.mxu0 0
        %371 = vmatpush1.bf16.msra.mxu0 %v353
        %372 = vmatprep.subr.bf16.mxu0 0
        %373 = vmatpush1.bf16.msra.mxu0 %v354
        %374 = vmatprep.subr.bf16.mxu0 0
        %375 = vmatpush1.bf16.msra.mxu0 %v355
        %376 = vmatprep.subr.bf16.mxu0 0
        %377 = vmatpush1.bf16.msra.mxu0 %v356
        %378 = vmatprep.subr.bf16.mxu0 0
        %379 = vmatpush1.bf16.msra.mxu0 %v357
        %380 = vmatprep.subr.bf16.mxu0 0
        %381 = vmatpush1.bf16.msra.mxu0 %v358
        %382 = vmatprep.subr.bf16.mxu0 0
        %383 = vmatpush1.bf16.msra.mxu0 %v359
        %384 = vmatprep.subr.bf16.mxu0 0
        %385 = vmatpush1.bf16.msra.mxu0 0
        %386 = vmatprep.subr.bf16.mxu0 0
        %387 = vmatpush1.bf16.msra.mxu0 0
        %388 = vmatprep.subr.bf16.mxu0 0
        %389 = vmatpush1.bf16.msra.mxu0 0
        %390 = vmatprep.subr.bf16.mxu0 0
        %391 = vmatpush1.bf16.msra.mxu0 0
        %392 = vmatprep.subr.bf16.mxu0 0
        %393 = vmatpush1.bf16.msra.mxu0 0
        %394 = vmatprep.subr.bf16.mxu0 0
        %395 = vmatpush1.bf16.msra.mxu0 0
        %396 = vmatprep.subr.bf16.mxu0 0
        %397 = vmatpush1.bf16.msra.mxu0 0
        %398 = vmatprep.subr.bf16.mxu0 0
        %399 = vmatpush1.bf16.msra.mxu0 0
        %400 = vmatprep.mubr.bf16.mxu0 0
        %401 = vmatmul.mubr.bf16.gmra.mrb[0].mxu0 %v316
        %v402 = vpop.f32.mrb[0].mxu0
        %v403 = vadd.f32 %v306, %v402
        %v404 = vpop.f32.mrb[0].mxu0
        %v405 = vpop.f32.mrb[0].mxu0
        %v406 = vadd.f32 %v306, %v405
        %v407 = vpop.f32.mrb[0].mxu0
        %408 = vmatprep.mubr.bf16.mxu0 0
        %409 = vmatmul.mubr.bf16.gmra.mrb[0].mxu0 %v317
        %v410 = vpop.f32.mrb[0].mxu0
        %v411 = vadd.f32 %v306, %v410
        %v412 = vpop.f32.mrb[0].mxu0
        %v413 = vpop.f32.mrb[0].mxu0
        %v414 = vadd.f32 %v306, %v413
        %v415 = vpop.f32.mrb[0].mxu0
        %416 = vdwg.mxu0
        %v417 = vld [vmem:[#allocation5 + $0x4] sm:$0xf]
        %v418 = vld [vmem:[#allocation5 + $0x10] sm:$0xf]
        %v419 = vld [vmem:[#allocation5 + $0x1c] sm:$0xf]
        %v420 = vld [vmem:[#allocation5 + $0x28] sm:$0xf]
        %v421 = vld [vmem:[#allocation5 + $0x34] sm:$0xf]
        %v422 = vld [vmem:[#allocation5 + $0x40] sm:$0xf]
        %v423 = vld [vmem:[#allocation5 + $0x4c] sm:$0xf]
        %v424 = vld [vmem:[#allocation5 + $0x58] sm:$0xf]
        %v425 = vld [vmem:[#allocation5 + $0x64] sm:$0xf]
        %v426 = vld [vmem:[#allocation5 + $0x70] sm:$0xf]
        %v427 = vld [vmem:[#allocation5 + $0x7c] sm:$0xf]
        %v428 = vld [vmem:[#allocation5 + $0x88] sm:$0xf]
        %v429 = vld [vmem:[#allocation5 + $0x94] sm:$0xf]
        %v430 = vld [vmem:[#allocation5 + $0xa0] sm:$0xf]
        %v431 = vld [vmem:[#allocation5 + $0xac] sm:$0xf]
        %v432 = vld [vmem:[#allocation5 + $0xb8] sm:$0xf]
        %v433 = vld [vmem:[%s2 + $0x1] sm:$0x1]
        %v435 = vlaneseq
        %v436 = vshrl.u32 %v435, 7
        %v437 = vsub.s32 0, %v436
        %v438 = vrot.slane %v433, %v437
        %v456 = vunpack.c.l.b16 %v417
        %v457 = vunpack.c.l.b16 %v418
        %v458 = vunpack.c.l.b16 %v419
        %v459 = vunpack.c.l.b16 %v420
        %v460 = vunpack.c.l.b16 %v421
        %v461 = vunpack.c.l.b16 %v422
        %v462 = vunpack.c.l.b16 %v423
        %v463 = vunpack.c.l.b16 %v424
        %v464 = vunpack.c.l.b16 %v425
        %v465 = vunpack.c.l.b16 %v426
        %v466 = vunpack.c.l.b16 %v427
        %v467 = vunpack.c.l.b16 %v428
        %v468 = vunpack.c.l.b16 %v429
        %v469 = vunpack.c.l.b16 %v430
        %v470 = vunpack.c.l.b16 %v431
        %v471 = vunpack.c.l.b16 %v432
        %v472 = vpack.c.b16 %v457, %v456
        %v473 = vpack.c.b16 %v459, %v458
        %v474 = vpack.c.b16 %v461, %v460
        %v475 = vpack.c.b16 %v463, %v462
        %v476 = vpack.c.b16 %v465, %v464
        %v477 = vpack.c.b16 %v467, %v466
        %v478 = vpack.c.b16 %v469, %v468
        %v479 = vpack.c.b16 %v471, %v470
        %488 = vmatprep.subr.bf16.mxu0 0
        %489 = vmatpush1.bf16.msra.mxu0 %v472
        %490 = vmatprep.subr.bf16.mxu0 0
        %491 = vmatpush1.bf16.msra.mxu0 %v473
        %492 = vmatprep.subr.bf16.mxu0 0
        %493 = vmatpush1.bf16.msra.mxu0 %v474
        %494 = vmatprep.subr.bf16.mxu0 0
        %495 = vmatpush1.bf16.msra.mxu0 %v475
        %496 = vmatprep.subr.bf16.mxu0 0
        %497 = vmatpush1.bf16.msra.mxu0 %v476
        %498 = vmatprep.subr.bf16.mxu0 0
        %499 = vmatpush1.bf16.msra.mxu0 %v477
        %500 = vmatprep.subr.bf16.mxu0 0
        %501 = vmatpush1.bf16.msra.mxu0 %v478
        %502 = vmatprep.subr.bf16.mxu0 0
        %503 = vmatpush1.bf16.msra.mxu0 %v479
        %504 = vmatprep.subr.bf16.mxu0 0
        %505 = vmatpush1.bf16.msra.mxu0 0
        %506 = vmatprep.subr.bf16.mxu0 0
        %507 = vmatpush1.bf16.msra.mxu0 0
        %508 = vmatprep.subr.bf16.mxu0 0
        %509 = vmatpush1.bf16.msra.mxu0 0
        %510 = vmatprep.subr.bf16.mxu0 0
        %511 = vmatpush1.bf16.msra.mxu0 0
        %512 = vmatprep.subr.bf16.mxu0 0
        %513 = vmatpush1.bf16.msra.mxu0 0
        %514 = vmatprep.subr.bf16.mxu0 0
        %515 = vmatpush1.bf16.msra.mxu0 0
        %516 = vmatprep.subr.bf16.mxu0 0
        %517 = vmatpush1.bf16.msra.mxu0 0
        %518 = vmatprep.subr.bf16.mxu0 0
        %519 = vmatpush1.bf16.msra.mxu0 0
        %520 = vmatprep.mubr.bf16.mxu0 0
        %521 = vmatmul.mubr.bf16.gmra.mrb[0].mxu0 %v316
        %v522 = vpop.f32.mrb[0].mxu0
        %v523 = vadd.f32 %v438, %v522
        %v524 = vpop.f32.mrb[0].mxu0
        %v525 = vpop.f32.mrb[0].mxu0
        %v526 = vadd.f32 %v438, %v525
        %v527 = vpop.f32.mrb[0].mxu0
        %528 = vmatprep.mubr.bf16.mxu0 0
        %529 = vmatmul.mubr.bf16.gmra.mrb[0].mxu0 %v317
        %v530 = vpop.f32.mrb[0].mxu0
        %v531 = vadd.f32 %v438, %v530
        %v532 = vpop.f32.mrb[0].mxu0
        %v533 = vpop.f32.mrb[0].mxu0
        %v534 = vadd.f32 %v438, %v533
        %v535 = vpop.f32.mrb[0].mxu0
        %536 = vdwg.mxu0
        %v537 = vld [vmem:[#allocation5 + $0x8] sm:$0xf]
        %v538 = vld [vmem:[#allocation5 + $0x14] sm:$0xf]
        %v539 = vld [vmem:[#allocation5 + $0x20] sm:$0xf]
        %v540 = vld [vmem:[#allocation5 + $0x2c] sm:$0xf]
        %v541 = vld [vmem:[#allocation5 + $0x38] sm:$0xf]
        %v542 = vld [vmem:[#allocation5 + $0x44] sm:$0xf]
        %v543 = vld [vmem:[#allocation5 + $0x50] sm:$0xf]
        %v544 = vld [vmem:[#allocation5 + $0x5c] sm:$0xf]
        %v545 = vld [vmem:[#allocation5 + $0x68] sm:$0xf]
        %v546 = vld [vmem:[#allocation5 + $0x74] sm:$0xf]
        %v547 = vld [vmem:[#allocation5 + $0x80] sm:$0xf]
        %v548 = vld [vmem:[#allocation5 + $0x8c] sm:$0xf]
        %v549 = vld [vmem:[#allocation5 + $0x98] sm:$0xf]
        %v550 = vld [vmem:[#allocation5 + $0xa4] sm:$0xf]
        %v551 = vld [vmem:[#allocation5 + $0xb0] sm:$0xf]
        %v552 = vld [vmem:[#allocation5 + $0xbc] sm:$0xf]
        %v553 = vld [vmem:[%s2 + $0x2] sm:$0x1]
        %v555 = vlaneseq
        %v556 = vshrl.u32 %v555, 7
        %v557 = vsub.s32 0, %v556
        %v558 = vrot.slane %v553, %v557
        %v576 = vunpack.c.l.b16 %v537
        %v577 = vunpack.c.l.b16 %v538
        %v578 = vunpack.c.l.b16 %v539
        %v579 = vunpack.c.l.b16 %v540
        %v580 = vunpack.c.l.b16 %v541
        %v581 = vunpack.c.l.b16 %v542
        %v582 = vunpack.c.l.b16 %v543
        %v583 = vunpack.c.l.b16 %v544
        %v584 = vunpack.c.l.b16 %v545
        %v585 = vunpack.c.l.b16 %v546
        %v586 = vunpack.c.l.b16 %v547
        %v587 = vunpack.c.l.b16 %v548
        %v588 = vunpack.c.l.b16 %v549
        %v589 = vunpack.c.l.b16 %v550
        %v590 = vunpack.c.l.b16 %v551
        %v591 = vunpack.c.l.b16 %v552
        %v592 = vpack.c.b16 %v577, %v576
        %v593 = vpack.c.b16 %v579, %v578
        %v594 = vpack.c.b16 %v581, %v580
        %v595 = vpack.c.b16 %v583, %v582
        %v596 = vpack.c.b16 %v585, %v584
        %v597 = vpack.c.b16 %v587, %v586
        %v598 = vpack.c.b16 %v589, %v588
        %v599 = vpack.c.b16 %v591, %v590
        %608 = vmatprep.subr.bf16.mxu0 0
        %609 = vmatpush1.bf16.msra.mxu0 %v592
        %610 = vmatprep.subr.bf16.mxu0 0
        %611 = vmatpush1.bf16.msra.mxu0 %v593
        %612 = vmatprep.subr.bf16.mxu0 0
        %613 = vmatpush1.bf16.msra.mxu0 %v594
        %614 = vmatprep.subr.bf16.mxu0 0
        %615 = vmatpush1.bf16.msra.mxu0 %v595
        %616 = vmatprep.subr.bf16.mxu0 0
        %617 = vmatpush1.bf16.msra.mxu0 %v596
        %618 = vmatprep.subr.bf16.mxu0 0
        %619 = vmatpush1.bf16.msra.mxu0 %v597
        %620 = vmatprep.subr.bf16.mxu0 0
        %621 = vmatpush1.bf16.msra.mxu0 %v598
        %622 = vmatprep.subr.bf16.mxu0 0
        %623 = vmatpush1.bf16.msra.mxu0 %v599
        %624 = vmatprep.subr.bf16.mxu0 0
        %625 = vmatpush1.bf16.msra.mxu0 0
        %626 = vmatprep.subr.bf16.mxu0 0
        %627 = vmatpush1.bf16.msra.mxu0 0
        %628 = vmatprep.subr.bf16.mxu0 0
        %629 = vmatpush1.bf16.msra.mxu0 0
        %630 = vmatprep.subr.bf16.mxu0 0
        %631 = vmatpush1.bf16.msra.mxu0 0
        %632 = vmatprep.subr.bf16.mxu0 0
        %633 = vmatpush1.bf16.msra.mxu0 0
        %634 = vmatprep.subr.bf16.mxu0 0
        %635 = vmatpush1.bf16.msra.mxu0 0
        %636 = vmatprep.subr.bf16.mxu0 0
        %637 = vmatpush1.bf16.msra.mxu0 0
        %638 = vmatprep.subr.bf16.mxu0 0
        %639 = vmatpush1.bf16.msra.mxu0 0
        %640 = vmatprep.mubr.bf16.mxu0 0
        %641 = vmatmul.mubr.bf16.gmra.mrb[0].mxu0 %v316
        %v642 = vpop.f32.mrb[0].mxu0
        %v643 = vadd.f32 %v558, %v642
        %v644 = vpop.f32.mrb[0].mxu0
        %v645 = vpop.f32.mrb[0].mxu0
        %v646 = vadd.f32 %v558, %v645
        %v647 = vpop.f32.mrb[0].mxu0
        %648 = vmatprep.mubr.bf16.mxu0 0
        %649 = vmatmul.mubr.bf16.gmra.mrb[0].mxu0 %v317
        %v650 = vpop.f32.mrb[0].mxu0
        %v651 = vadd.f32 %v558, %v650
        %v652 = vpop.f32.mrb[0].mxu0
        %v653 = vpop.f32.mrb[0].mxu0
        %v654 = vadd.f32 %v558, %v653
        %v655 = vpop.f32.mrb[0].mxu0
        %656 = vdwg.mxu0
        %v657 = vmul.f32 %v403, 0.088388346
        %v658 = vmul.f32 %v406, 0.088388346
        %v659 = vmul.f32 %v411, 0.088388346
        %v660 = vmul.f32 %v414, 0.088388346
        %v661 = vpack.c.bf16 %v658, %v657
        %v662 = vpack.c.bf16 %v660, %v659
        %v665 = vunpack.c.l.b16 %v661
        %v666 = vunpack.c.h.b16 %v661
        %v667 = vunpack.c.l.b16 %v662
        %v668 = vunpack.c.h.b16 %v662
        %v669 = vpack.c.b16 %v665, %v665
        %v670 = vpack.c.b16 %v666, %v666
        %v671 = vpack.c.b16 %v667, %v667
        %v672 = vpack.c.b16 %v668, %v668
        %677 = vst [vmem:[%s261] sm:$0xf] %v669
        %678 = vst [vmem:[%s261 + $0x4] sm:$0xf] %v670
        %679 = vst [vmem:[%s261 + $0x8] sm:$0xf] %v671
        %680 = vst [vmem:[%s261 + $0xc] sm:$0xf] %v672
        %v681 = vpack.c.bf16 %v526, %v523
        %v682 = vpack.c.bf16 %v534, %v531
        %v685 = vunpack.c.l.b16 %v681
        %v686 = vunpack.c.h.b16 %v681
        %v687 = vunpack.c.l.b16 %v682
        %v688 = vunpack.c.h.b16 %v682
        %v689 = vpack.c.b16 %v685, %v685
        %v690 = vpack.c.b16 %v686, %v686
        %v691 = vpack.c.b16 %v687, %v687
        %v692 = vpack.c.b16 %v688, %v688
        %697 = vst [vmem:[%s268] sm:$0xf] %v689
        %698 = vst [vmem:[%s268 + $0x4] sm:$0xf] %v690
        %699 = vst [vmem:[%s268 + $0x8] sm:$0xf] %v691
        %700 = vst [vmem:[%s268 + $0xc] sm:$0xf] %v692
        %v701 = vpack.c.bf16 %v646, %v643
        %v702 = vpack.c.bf16 %v654, %v651
        %v705 = vunpack.c.l.b16 %v701
        %v706 = vunpack.c.h.b16 %v701
        %v707 = vunpack.c.l.b16 %v702
        %v708 = vunpack.c.h.b16 %v702
        %v709 = vpack.c.b16 %v705, %v705
        %v710 = vpack.c.b16 %v706, %v706
        %v711 = vpack.c.b16 %v707, %v707
        %v712 = vpack.c.b16 %v708, %v708
        %717 = vst [vmem:[%s275] sm:$0xf] %v709
        %718 = vst [vmem:[%s275 + $0x4] sm:$0xf] %v710
        %719 = vst [vmem:[%s275 + $0x8] sm:$0xf] %v711
        %720 = vst [vmem:[%s275 + $0xc] sm:$0xf] %v712
        %s721 = sand.u32 %s103, 1
        %s722 = scalar_lea.sflag [#allocation4], %s721
        %s723 = sand.u32 %s103, 1
        %s724 = smul.addr %s723, 16
        %s725 = scalar_lea.vmem [#allocation7], %s724
        %s726 = sand.u32 %s27, 1
        %s727 = scalar_lea.sflag [#allocation9], %s726
        %s728 = sand.u32 %s129, 1
        %s729 = smul.addr %s728, 16
        %s730 = scalar_lea.vmem [#allocation8], %s729
        %s731 = sand.u32 %s27, 1
        %s732 = scalar_lea.sflag [#allocation9], %s731
        %s733 = sand.u32 %s155, 1
        %s734 = smul.addr %s733, 16
        %s735 = scalar_lea.vmem [#allocation10], %s734
        // Predicated region
        $region41: #{tpu_custom_call.1} parent=31 // pred_check
          %p736 = pneg %p113
        $region42: #{tpu_custom_call.1} parent=31 // pred_check_branch
          %738 = sbr.rel (%p736) target = $region44
        $region43: #{tpu_custom_call.1} parent=31 // pred_region
          %s739 = smul.u32 4, %s27
          %s741 = ssub.s32 256, 256
          %742 = vsyncadd %s722, %s741
          %s743 = smul.addr %s739, 64
          %s744 = scalar_lea.hbm %s3, %s743
          %s745 = sshll.u32 %s725, 4
          %s746 = int_to_ptr.vmem [resolvable:$true] %s745
          %751 = dma.vmem_to_hbm [thread:$0]  %s746, 256, %s744, %s722, 64, 64, 4
        $region44: #{tpu_custom_call.1} parent=31 // pred_fallthru
          _
        // Predicated region
        $region45: #{tpu_custom_call.1} parent=31 // pred_check
          %p752 = pneg %p139
        $region46: #{tpu_custom_call.1} parent=31 // pred_check_branch
          %754 = sbr.rel (%p752) target = $region48
        $region47: #{tpu_custom_call.1} parent=31 // pred_region
          %s755 = smul.u32 4, %s27
          %s757 = ssub.s32 256, 256
          %758 = vsyncadd %s727, %s757
          %s759 = smul.addr %s755, 64
          %s760 = scalar_lea.hbm %s4, %s759
          %s761 = sshll.u32 %s730, 4
          %s762 = int_to_ptr.vmem [resolvable:$true] %s761
          %767 = dma.vmem_to_hbm [thread:$0]  %s762, 256, %s760, %s727, 64, 64, 4
        $region48: #{tpu_custom_call.1} parent=31 // pred_fallthru
          _
        // Predicated region
        $region49: #{tpu_custom_call.1} parent=31 // pred_check
          %p768 = pneg %p165
        $region50: #{tpu_custom_call.1} parent=31 // pred_check_branch
          %770 = sbr.rel (%p768) target = $region52
        $region51: #{tpu_custom_call.1} parent=31 // pred_region
          %s771 = smul.u32 4, %s27
          %s773 = ssub.s32 256, 256
          %774 = vsyncadd %s732, %s773
          %s775 = smul.addr %s771, 64
          %s776 = scalar_lea.hbm %s5, %s775
          %s777 = sshll.u32 %s735, 4
          %s778 = int_to_ptr.vmem [resolvable:$true] %s777
          %783 = dma.vmem_to_hbm [thread:$0]  %s778, 256, %s776, %s732, 64, 64, 4
        $region52: #{tpu_custom_call.1} parent=31 // pred_fallthru
          _
      $region32: #{tpu_custom_call.1} parent=5 // pred_fallthru
        _
      %p784 = scmp.le.s32.totalorder 2, %s22
      // Predicated region
      $region53: #{tpu_custom_call.1} parent=5 // pred_check
        %p785 = pneg %p784
      $region54: #{tpu_custom_call.1} parent=5 // pred_check_branch
        %787 = sbr.rel (%p785) target = $region56
      $region55: #{tpu_custom_call.1} parent=5 // pred_region
        %s788 = ssub.s32 %s22, 2
        // Predicated region
        $region57: #{tpu_custom_call.1} parent=55 // pred_check
          %p789 = pneg %p119
        $region58: #{tpu_custom_call.1} parent=55 // pred_check_branch
          %791 = sbr.rel (%p789) target = $region60
        $region59: #{tpu_custom_call.1} parent=55 // pred_region
          %s792 = sand.u32 %s104, 1
          %s793 = scalar_lea.sflag [#allocation4], %s792
          %s794 = sand.u32 %s104, 1
          %s795 = smul.addr %s794, 16
          %s796 = scalar_lea.vmem [#allocation7], %s795
          %797 = dma.done %s793, 256
        $region60: #{tpu_custom_call.1} parent=55 // pred_fallthru
          _
        // Predicated region
        $region61: #{tpu_custom_call.1} parent=55 // pred_check
          %p798 = pneg %p145
        $region62: #{tpu_custom_call.1} parent=55 // pred_check_branch
          %800 = sbr.rel (%p798) target = $region64
        $region63: #{tpu_custom_call.1} parent=55 // pred_region
          %s801 = sand.u32 %s28, 1
          %s802 = scalar_lea.sflag [#allocation9], %s801
          %s803 = sand.u32 %s130, 1
          %s804 = smul.addr %s803, 16
          %s805 = scalar_lea.vmem [#allocation8], %s804
          %806 = dma.done %s802, 256
        $region64: #{tpu_custom_call.1} parent=55 // pred_fallthru
          _
        // Predicated region
        $region65: #{tpu_custom_call.1} parent=55 // pred_check
          %p807 = pneg %p171
        $region66: #{tpu_custom_call.1} parent=55 // pred_check_branch
          %809 = sbr.rel (%p807) target = $region68
        $region67: #{tpu_custom_call.1} parent=55 // pred_region
          %s810 = sand.u32 %s28, 1
          %s811 = scalar_lea.sflag [#allocation9], %s810
          %s812 = sand.u32 %s156, 1
          %s813 = smul.addr %s812, 16
          %s814 = scalar_lea.vmem [#allocation10], %s813
          %815 = dma.done %s811, 256
        $region68: #{tpu_custom_call.1} parent=55 // pred_fallthru
          _
      $region56: #{tpu_custom_call.1} parent=5 // pred_fallthru
        _
    $region6: #{tpu_custom_call.1} parent=1 // loop_footer
      %s26 = sadd.s32 1, %s22
    $region7: #{tpu_custom_call.1} parent=1 // loop_footer_branch
      %21 = sbr.rel target = $region3
    $region8: #{tpu_custom_call.1} parent=1 // loop_exit
      _
    %816 = vsyncpa [#allocation3], 1
    %s817 = scalar_lea.sflag [#allocation3], 1
    %818 = vsyncpa %s817, 1
    %819 = vsyncpa [#allocation6], 1
    %820 = vsyncpa [#allocation4], 1
    %s821 = scalar_lea.sflag [#allocation4], 1
    %822 = vsyncpa %s821, 1
    %823 = vsyncpa [#allocation9], 1
    %s824 = scalar_lea.sflag [#allocation9], 1
    %825 = vsyncpa %s824, 1

</llo_original>
